<compile_context>
chip_gen: v5e
topology: v5e:2x2
jax: 0.10.0
libtpu: 0.0.40
codegen_flags: <defaults>
</compile_context>

<pallas_src>
import functools

import jax
import jax.numpy as jnp
from jax import lax
from jax.experimental import pallas as pl
from jax.experimental.pallas import tpu as pltpu

RMS_EPS = 1.1920928955078125e-07  # torch.finfo(torch.float32).eps (nn.RMSNorm default)
NEG_INF = -1e30


def _sublane_step(dtype):
    """Minimum sublane tile multiple for a dtype: 8 for f32, 16 for bf16, 32 for int8."""
    return max(8, 32 // jnp.dtype(dtype).itemsize)


def _pick_tile(dim, target, step):
    """Largest multiple of `step` <= target that evenly divides `dim`, else `dim`.
    NOTE: falls back to the full dimension when no aligned divisor exists."""
    if dim <= target:
        return dim
    t = (target // step) * step
    while t >= step:
        if dim % t == 0:
            return t
        t -= step
    return dim


@functools.lru_cache(maxsize=None)
def _vmem_limit_bytes():
    """Per-generation VMEM request: physical capacity minus ~16 MiB compiler headroom
    (=> ~48 MiB on v7x, ~112 MiB on v5e/v6e). Falls back to 48 MiB if the query fails."""
    cap = 64 * 1024 * 1024
    try:
        info = pltpu.get_tpu_info()
        cap = int(getattr(info, "vmem_capacity_bytes", cap))
    except Exception:
        pass
    return max(min(cap - 16 * 1024 * 1024, 112 * 1024 * 1024), 32 * 1024 * 1024)


def _cparams(dims):
    return pltpu.CompilerParams(dimension_semantics=dims,
                                vmem_limit_bytes=_vmem_limit_bytes())


# ----------------------------- batched matmul --------------------------------

def _bmm_kernel(a_ref, b_ref, o_ref, acc_ref):
    @pl.when(pl.program_id(3) == 0)
    def _():
        acc_ref[...] = jnp.zeros_like(acc_ref)

    acc_ref[...] += jnp.dot(a_ref[0], b_ref[0], preferred_element_type=jnp.float32)

    @pl.when(pl.program_id(3) == pl.num_programs(3) - 1)
    def _():
        o_ref[0] = acc_ref[...].astype(o_ref.dtype)


def bmm(a, b, *, tm=512, tn=1024, tk=512):
    """(H, M, K) @ (H, K, N) -> (H, M, N), tiled over (M, N, K), f32 accumulation.
    Large tiles cut weight/activation re-streaming on DMA-bound projection GEMMs."""
    H, M, K = a.shape
    H2, K2, N = b.shape
    assert H == H2 and K == K2
    tm = _pick_tile(M, tm, _sublane_step(a.dtype))
    tn = _pick_tile(N, tn, 128)
    tk = _pick_tile(K, tk, 128)
    return pl.pallas_call(
        _bmm_kernel,
        out_shape=jax.ShapeDtypeStruct((H, M, N), a.dtype),
        grid=(H, M // tm, N // tn, K // tk),
        in_specs=[
            pl.BlockSpec((1, tm, tk), lambda h, i, j, k: (h, i, k)),
            pl.BlockSpec((1, tk, tn), lambda h, i, j, k: (h, k, j)),
        ],
        out_specs=pl.BlockSpec((1, tm, tn), lambda h, i, j, k: (h, i, j)),
        scratch_shapes=[pltpu.VMEM((tm, tn), jnp.float32)],
        compiler_params=_cparams(("parallel", "parallel", "parallel", "arbitrary")),
    )(a, b)


def linear(x2d, w):
    """x2d: (M, K), w: (K, N) (in, out layout) -> (M, N)."""
    return bmm(x2d[None], w[None])[0]


# -------------------------------- RMSNorm ------------------------------------

def _rmsnorm_kernel(x_ref, g_ref, o_ref):
    x = x_ref[...].astype(jnp.float32)
    ms = jnp.mean(x * x, axis=-1, keepdims=True)
    o_ref[...] = (x * lax.rsqrt(ms + RMS_EPS) * g_ref[...].astype(jnp.float32)
                  ).astype(o_ref.dtype)


def rmsnorm(x2d, gamma, *, block_rows=512):
    M, K = x2d.shape
    bm = _pick_tile(M, block_rows, _sublane_step(x2d.dtype))
    return pl.pallas_call(
        _rmsnorm_kernel,
        out_shape=jax.ShapeDtypeStruct((M, K), x2d.dtype),
        grid=(M // bm,),
        in_specs=[pl.BlockSpec((bm, K), lambda i: (i, 0)),
                  pl.BlockSpec((1, K), lambda i: (0, 0))],
        out_specs=pl.BlockSpec((bm, K), lambda i: (i, 0)),
        compiler_params=_cparams(("parallel",)),
    )(x2d, gamma.reshape(1, K))


# --------------------------- fused MLA attention ------------------------------

def _mla_attn_kernel(qn_ref, qpe_ref, kvf_ref, wk_ref, wv_ref, o_ref,
                     qf_sc, m_sc, l_sc, acc_sc, *, scale, clr, tkv):
    tq = qf_sc.shape[0]
    row0 = pl.program_id(2) * tq
    num_kv = kvf_ref.shape[1] // tkv

    # Absorb wkv_b_k into q_nope once per (b, h, q-tile); concat with q_pe so the
    # score phase is a single lane-dense contraction over clr + rope.
    q_c = jnp.dot(qn_ref[0, 0], wk_ref[0], preferred_element_type=jnp.float32)
    qf_sc[:, :clr] = q_c.astype(qf_sc.dtype)
    qf_sc[:, clr:] = qpe_ref[0, 0]
    m_sc[...] = jnp.full_like(m_sc, -jnp.inf)
    l_sc[...] = jnp.zeros_like(l_sc)
    acc_sc[...] = jnp.zeros_like(acc_sc)
    qf = qf_sc[...]

    def step(start, apply_mask):
        kvf = kvf_ref[0, pl.ds(start, tkv), :]               # (tkv, clr + rope)
        # Scores: contract on last dims (MXU consumes the KV tile without a transpose).
        s = lax.dot_general(qf, kvf, (((1,), (1,)), ((), ())),
                            preferred_element_type=jnp.float32) * scale
        if apply_mask:
            # Only diagonal-straddling tiles pay for the iota/compare/select.
            row = lax.broadcasted_iota(jnp.int32, (tq, tkv), 0) + row0
            col = lax.broadcasted_iota(jnp.int32, (tq, tkv), 1) + start
            s = jnp.where(col <= row, s, NEG_INF)
        m_prev = m_sc[...]
        m_new = jnp.maximum(m_prev, jnp.max(s, axis=-1, keepdims=True))
        alpha = jnp.exp(m_prev - m_new)
        p = jnp.exp(s - m_new)
        l_sc[...] = alpha * l_sc[...] + jnp.sum(p, axis=-1, keepdims=True)
        acc_sc[...] = alpha * acc_sc[...] + jnp.dot(
            p.astype(kvf.dtype), kvf[:, :clr], preferred_element_type=jnp.float32)
        m_sc[...] = m_new

    def body(ki, carry):
        start = pl.multiple_of(ki * tkv, tkv)
        last_col = start + tkv - 1

        @pl.when(last_col <= row0)          # fully visible tile: no mask math at all
        def _():
            step(start, apply_mask=False)

        @pl.when(jnp.logical_and(last_col > row0, start <= row0 + tq - 1))
        def _():                            # straddles the causal diagonal
            step(start, apply_mask=True)

        # start > row0 + tq - 1: fully-masked tile — skipped (no MXU / exp / DMA work).
        return carry

    lax.fori_loop(0, num_kv, body, 0)

    ctx = acc_sc[...] * pl.reciprocal(l_sc[...], approx=True)
    o_ref[0, 0] = jnp.dot(ctx.astype(wv_ref.dtype), wv_ref[0],
                          preferred_element_type=jnp.float32).astype(o_ref.dtype)


def mla_attention(q_nope, q_pe, kv_full, wk, wv, scale, *, tq=256, tkv=512):
    """q_nope/q_pe: (b, h, s, nope|rope); kv_full: (b, t, clr+rope);
    wk: (h, nope, clr); wv: (h, clr, v).  Returns (b, h, s, v) = ctx @ wkv_b_v.
    NOTE: on v5e prefer tq=128 (128-wide MXU, weaker VPU / vreg budget)."""
    b, h, s, nope = q_nope.shape
    rope = q_pe.shape[-1]
    t = kv_full.shape[1]
    clr = wk.shape[-1]
    vdim = wv.shape[-1]
    assert kv_full.shape[-1] == clr + rope
    tq = _pick_tile(s, tq, _sublane_step(q_nope.dtype))
    tkv = _pick_tile(t, tkv, 128)
    kernel = functools.partial(_mla_attn_kernel, scale=scale, clr=clr, tkv=tkv)
    return pl.pallas_call(
        kernel,
        out_shape=jax.ShapeDtypeStruct((b, h, s, vdim), q_nope.dtype),
        grid=(b, h, s // tq),
        in_specs=[
            pl.BlockSpec((1, 1, tq, nope), lambda bi, hi, qi: (bi, hi, qi, 0)),
            pl.BlockSpec((1, 1, tq, rope), lambda bi, hi, qi: (bi, hi, qi, 0)),
            # Whole latent-KV stream resident in VMEM: block index depends only on bi,
            # so kv||k_pe is DMA'd once per batch element and reused by every head and
            # q-tile instead of once per innermost grid step.
            pl.BlockSpec((1, t, clr + rope), lambda bi, hi, qi: (bi, 0, 0)),
            pl.BlockSpec((1, nope, clr), lambda bi, hi, qi: (hi, 0, 0)),
            pl.BlockSpec((1, clr, vdim), lambda bi, hi, qi: (hi, 0, 0)),
        ],
        out_specs=pl.BlockSpec((1, 1, tq, vdim),
                               lambda bi, hi, qi: (bi, hi, qi, 0)),
        scratch_shapes=[
            pltpu.VMEM((tq, clr + rope), q_nope.dtype),   # q_c || q_pe (compute dtype)
            pltpu.VMEM((tq, 1), jnp.float32),             # running max
            pltpu.VMEM((tq, 1), jnp.float32),             # running denom
            pltpu.VMEM((tq, clr), jnp.float32),           # latent ctx accumulator
        ],
        compiler_params=_cparams(("parallel", "parallel", "parallel")),
    )(q_nope, q_pe, kv_full, wk, wv)


# ------------------------------- JAX glue ------------------------------------

def precompute_freqs_cis(seqlen, rope_dim, theta=10000.0):
    inv = 1.0 / (theta ** (jnp.arange(0, rope_dim, 2, dtype=jnp.float32) / rope_dim))
    t = jnp.arange(seqlen, dtype=jnp.float32)
    ang = jnp.outer(t, inv)
    return jnp.cos(ang), jnp.sin(ang)  # each (seq, rope_dim // 2)


def apply_rotary_emb(x, cos, sin):
    # x: (b, s, h, r) interleaved (real, imag) pairs — mirrors torch.view_as_complex
    b, s, h, r = x.shape
    xf = x.astype(jnp.float32).reshape(b, s, h, r // 2, 2)
    xr, xi = xf[..., 0], xf[..., 1]
    c = cos.reshape(1, s, 1, r // 2)
    sn = sin.reshape(1, s, 1, r // 2)
    yr = xr * c - xi * sn
    yi = xr * sn + xi * c
    return jnp.stack([yr, yi], axis=-1).reshape(b, s, h, r).astype(x.dtype)


def mla_forward(params, x, cos, sin, cfg, softmax_scale=None, compute_dtype=None):
    """compute_dtype=jnp.bfloat16 feeds bf16 end-to-end (activations, latent KV stream,
    absorbed weights); accumulators inside the kernels stay f32."""
    if compute_dtype is not None:
        x = x.astype(compute_dtype)
        params = jax.tree_util.tree_map(lambda p: p.astype(compute_dtype), params)

    b, s, dim = x.shape
    h = cfg["n_heads"]
    nope, rope = cfg["qk_nope_head_dim"], cfg["qk_rope_head_dim"]
    vdim, clr = cfg["v_head_dim"], cfg["kv_lora_rank"]
    qk_head_dim = nope + rope
    scale = qk_head_dim ** (-0.5) if softmax_scale is None else softmax_scale
    x2d = x.reshape(b * s, dim)

    # q projection (low-rank path with RMSNorm)
    if cfg["q_lora_rank"] == 0:
        q = linear(x2d, params["wq"])
    else:
        q = linear(rmsnorm(linear(x2d, params["wq_a"]), params["q_norm"]),
                   params["wq_b"])
    q = q.reshape(b, s, h, qk_head_dim)
    q_nope = q[..., :nope]
    q_pe = apply_rotary_emb(q[..., nope:], cos, sin)                 # (b, s, h, rope)

    # kv projection -> latent kv + rotary k, concatenated once (lane-dense stream)
    kvp = linear(x2d, params["wkv_a"]).reshape(b, s, clr + rope)
    kv_c = kvp[..., :clr]
    k_pe = apply_rotary_emb(kvp[..., clr:][:, :, None, :], cos, sin)[:, :, 0, :]
    kv_n = rmsnorm(kv_c.reshape(b * s, clr), params["kv_norm"]).reshape(b, s, clr)
    kv_full = jnp.concatenate([kv_n, k_pe], axis=-1)                 # (b, t, clr+rope)

    # wkv_b stays in weight form; absorption happens inside the attention kernel
    wkv_b = params["wkv_b"].reshape(h, nope + vdim, clr)
    wk = wkv_b[:, :nope, :]                                          # (h, nope, clr)
    wv = jnp.transpose(wkv_b[:, nope:, :], (0, 2, 1))                # (h, clr, v)

    # TODO(synk): eliminate the (b,s,h,d)<->(b,h,s,d) XLA transposes by emitting q /
    # attention-out directly head-major from the GEMMs (needs v_head_dim % 128 == 0).
    q_nope_h = jnp.transpose(q_nope, (0, 2, 1, 3))                   # (b, h, s, nope)
    q_pe_h = jnp.transpose(q_pe, (0, 2, 1, 3))                       # (b, h, s, rope)

    out_v = mla_attention(q_nope_h, q_pe_h, kv_full, wk, wv, scale)  # (b, h, s, v)
    out_v = jnp.transpose(out_v, (0, 2, 1, 3)).reshape(b * s, h * vdim)
    out = linear(out_v, params["wo"])
    return out.reshape(b, s, dim)


# ---------------------------- pure-jnp reference ------------------------------

def mla_reference(params, x, cos, sin, mask, cfg):
    b, s, dim = x.shape
    h = cfg["n_heads"]
    nope, rope = cfg["qk_nope_head_dim"], cfg["qk_rope_head_dim"]
    vdim, clr = cfg["v_head_dim"], cfg["kv_lora_rank"]
    scale = (nope + rope) ** (-0.5)

    def rms(v, g):
        vf = v.astype(jnp.float32)
        return (vf * lax.rsqrt(jnp.mean(vf * vf, -1, keepdims=True) + RMS_EPS) * g
                ).astype(v.dtype)

    x2d = x.reshape(b * s, dim)
    q = jnp.dot(rms(jnp.dot(x2d, params["wq_a"]), params["q_norm"]), params["wq_b"])
    q = q.reshape(b, s, h, nope + rope)
    q_nope, q_pe = q[..., :nope], apply_rotary_emb(q[..., nope:], cos, sin)

    kvp = jnp.dot(x2d, params["wkv_a"]).reshape(b, s, clr + rope)
    kv_c = kvp[..., :clr]
    k_pe = apply_rotary_emb(kvp[..., clr:][:, :, None, :], cos, sin)[:, :, 0, :]

    wkv_b = params["wkv_b"].reshape(h, nope + vdim, clr)
    q_abs = jnp.einsum("bshd,hdc->bshc", q_nope, wkv_b[:, :nope])
    kv_n = rms(kv_c, params["kv_norm"])

    scores = (jnp.einsum("bshc,btc->bsht", q_abs, kv_n)
              + jnp.einsum("bshr,btr->bsht", q_pe, k_pe)) * scale
    scores = scores + mask[None, :, None, :]
    p = jax.nn.softmax(scores.astype(jnp.float32), axis=-1).astype(x.dtype)
    ctx = jnp.einsum("bsht,btc->bshc", p, kv_n)
    out = jnp.einsum("bshc,hdc->bshd", ctx, wkv_b[:, -vdim:])
    return jnp.dot(out.reshape(b, s, h * vdim), params["wo"])


# --------------------------------- main ---------------------------------------

if __name__ == "__main__":
    cfg = dict(dim=32, n_heads=2, q_lora_rank=16, kv_lora_rank=16,
               qk_nope_head_dim=16, qk_rope_head_dim=8, v_head_dim=16)
    b, s = 2, 8
    h = cfg["n_heads"]
    qk_head_dim = cfg["qk_nope_head_dim"] + cfg["qk_rope_head_dim"]

    keys = jax.random.split(jax.random.PRNGKey(0), 8)

    def init(k, shape, scl=0.05):
        return scl * jax.random.normal(k, shape, dtype=jnp.float32)

    params = {
        "wq_a":   init(keys[0], (cfg["dim"], cfg["q_lora_rank"])),          # (in, out)
        "q_norm": jnp.ones((cfg["q_lora_rank"],), jnp.float32),
        "wq_b":   init(keys[1], (cfg["q_lora_rank"], h * qk_head_dim)),
        "wkv_a":  init(keys[2], (cfg["dim"],
                                 cfg["kv_lora_rank"] + cfg["qk_rope_head_dim"])),
        "kv_norm": jnp.ones((cfg["kv_lora_rank"],), jnp.float32),
        # wkv_b kept in torch (out, in) layout for the per-head view / absorption
        "wkv_b":  init(keys[3], (h * (cfg["qk_nope_head_dim"] + cfg["v_head_dim"]),
                                 cfg["kv_lora_rank"])),
        "wo":     init(keys[4], (h * cfg["v_head_dim"], cfg["dim"])),        # (in, out)
    }

    x = 0.1 * jax.random.normal(keys[5], (b, s, cfg["dim"]), dtype=jnp.float32)
    cos, sin = precompute_freqs_cis(s, cfg["qk_rope_head_dim"])

    # f32 path — strict check against the pure-jnp reference (explicit causal mask;
    # the kernel generates its mask in-kernel and skips fully-masked tiles).
    out = mla_forward(params, x, cos, sin, cfg)
    out = jax.block_until_ready(out)
    assert out.shape == (b, s, cfg["dim"]) and out.dtype == jnp.float32

    mask = jnp.triu(jnp.full((s, s), NEG_INF, dtype=jnp.float32), k=1)
    ref = mla_reference(params, x, cos, sin, mask, cfg)
    if not jnp.allclose(out, ref, atol=3e-3, rtol=3e-2):
        raise AssertionError(
            f"f32 mismatch vs reference, max abs err="
            f"{float(jnp.max(jnp.abs(out - ref)))}")

    # bf16 end-to-end path (activations, latent KV stream, absorbed weights in bf16;
    # f32 accumulators in-kernel) — halves HBM/VMEM traffic on all generations.
    out_bf16 = mla_forward(params, x, cos, sin, cfg, compute_dtype=jnp.bfloat16)
    out_bf16 = jax.block_until_ready(out_bf16)
    assert out_bf16.shape == (b, s, cfg["dim"]) and out_bf16.dtype == jnp.bfloat16
    if not jnp.allclose(out_bf16.astype(jnp.float32), ref, atol=1e-2, rtol=1e-1):
        raise AssertionError(
            f"bf16 mismatch vs reference, max abs err="
            f"{float(jnp.max(jnp.abs(out_bf16.astype(jnp.float32) - ref)))}")

    print("KERNEL_OK")
</pallas_src>

<mosaic_0001>
module attributes {stable_mosaic.version = 11 : i64} {
  func.func @_bmm_kernel(%arg0: i32, %arg1: i32, %arg2: i32, %arg3: i32, %arg4: memref<1x16x32xf32, #tpu.memory_space<vmem>>, %arg5: memref<1x32x16xf32, #tpu.memory_space<vmem>>, %arg6: memref<1x16x16xf32, #tpu.memory_space<vmem>>, %arg7: memref<16x16xf32, #tpu.memory_space<vmem>>) attributes {dimension_semantics = [#tpu.dimension_semantics<parallel>, #tpu.dimension_semantics<parallel>, #tpu.dimension_semantics<parallel>, #tpu.dimension_semantics<arbitrary>], iteration_bounds = array<i64: 1, 1, 1, 1>, scalar_prefetch = 0 : i64, scratch_operands = 1 : i64, tpu.core_type = #tpu.core_type<tc>, window_params = [{transform_indices = @transform_0, window_bounds = array<i64: 1, 16, 32>}, {transform_indices = @transform_1, window_bounds = array<i64: 1, 32, 16>}, {transform_indices = @transform_2, window_bounds = array<i64: 1, 16, 16>}]} {
    %c0_i32 = arith.constant 0 : i32
    %0 = arith.cmpi eq, %arg3, %c0_i32 : i32
    %1 = arith.extui %0 : i1 to i32
    %c0_i32_0 = arith.constant 0 : i32
    %2 = arith.cmpi ne, %1, %c0_i32_0 : i32
    scf.if %2 {
      %cst_12 = arith.constant 0.000000e+00 : f32
      %14 = vector.broadcast %cst_12 : f32 to vector<16x16xf32>
      %c0_13 = arith.constant 0 : index
      %c0_14 = arith.constant 0 : index
      %15 = vector.load %arg7[%c0_13, %c0_14] : memref<16x16xf32, #tpu.memory_space<vmem>>, vector<16x16xf32>
      tpu.vector_store %arg7[%c0_13, %c0_14], %14 {strides = array<i32>} : memref<16x16xf32, #tpu.memory_space<vmem>>, vector<16x16xf32>,
    } else {
    }
    %c0 = arith.constant 0 : index
    %c0_1 = arith.constant 0 : index
    %3 = vector.load %arg7[%c0, %c0_1] : memref<16x16xf32, #tpu.memory_space<vmem>>, vector<16x16xf32>
    %c0_2 = arith.constant 0 : index
    %c0_3 = arith.constant 0 : index
    %c0_4 = arith.constant 0 : index
    %4 = vector.load %arg4[%c0_2, %c0_3, %c0_4] : memref<1x16x32xf32, #tpu.memory_space<vmem>>, vector<1x16x32xf32>
    %5 = vector.shape_cast %4 : vector<1x16x32xf32> to vector<16x32xf32>
    %c0_5 = arith.constant 0 : index
    %c0_6 = arith.constant 0 : index
    %c0_7 = arith.constant 0 : index
    %6 = vector.load %arg5[%c0_5, %c0_6, %c0_7] : memref<1x32x16xf32, #tpu.memory_space<vmem>>, vector<1x32x16xf32>
    %7 = vector.shape_cast %6 : vector<1x32x16xf32> to vector<32x16xf32>
    %cst = arith.constant dense<0.000000e+00> : vector<16x16xf32>
    %8 = tpu.matmul %5, %7, %cst {dimension_numbers = #tpu.dot_dimension_numbers<[1], [0], [0], [1], [0, 0, 1, 1], [], []>} : vector<16x32xf32>, vector<32x16xf32>, vector<16x16xf32> -> vector<16x16xf32>
    %9 = arith.addf %3, %8 : vector<16x16xf32>
    %c0_8 = arith.constant 0 : index
    %c0_9 = arith.constant 0 : index
    %10 = vector.load %arg7[%c0_8, %c0_9] : memref<16x16xf32, #tpu.memory_space<vmem>>, vector<16x16xf32>
    tpu.vector_store %arg7[%c0_8, %c0_9], %9 {strides = array<i32>} : memref<16x16xf32, #tpu.memory_space<vmem>>, vector<16x16xf32>,
    %c0_i32_10 = arith.constant 0 : i32
    %11 = arith.cmpi eq, %arg3, %c0_i32_10 : i32
    %12 = arith.extui %11 : i1 to i32
    %c0_i32_11 = arith.constant 0 : i32
    %13 = arith.cmpi ne, %12, %c0_i32_11 : i32
    scf.if %13 {
      %c0_12 = arith.constant 0 : index
      %c0_13 = arith.constant 0 : index
      %14 = vector.load %arg7[%c0_12, %c0_13] : memref<16x16xf32, #tpu.memory_space<vmem>>, vector<16x16xf32>
      %c0_14 = arith.constant 0 : index
      %c0_15 = arith.constant 0 : index
      %c0_16 = arith.constant 0 : index
      %15 = vector.load %arg6[%c0_14, %c0_15, %c0_16] : memref<1x16x16xf32, #tpu.memory_space<vmem>>, vector<1x16x16xf32>
      %16 = vector.shape_cast %15 : vector<1x16x16xf32> to vector<16x16xf32>
      %17 = vector.shape_cast %14 : vector<16x16xf32> to vector<1x16x16xf32>
      tpu.vector_store %arg6[%c0_14, %c0_15, %c0_16], %17 {strides = array<i32>} : memref<1x16x16xf32, #tpu.memory_space<vmem>>, vector<1x16x16xf32>,
    } else {
    }
    return
  }
  func.func @transform_0(%arg0: i32, %arg1: i32, %arg2: i32, %arg3: i32) -> (i32, i32, i32) {
    %c0_i32 = arith.constant 0 : i32
    return %arg0, %arg1, %arg3 : i32, i32, i32
  }
  func.func @transform_1(%arg0: i32, %arg1: i32, %arg2: i32, %arg3: i32) -> (i32, i32, i32) {
    %c0_i32 = arith.constant 0 : i32
    return %arg0, %arg3, %arg2 : i32, i32, i32
  }
  func.func @transform_2(%arg0: i32, %arg1: i32, %arg2: i32, %arg3: i32) -> (i32, i32, i32) {
    %c0_i32 = arith.constant 0 : i32
    return %arg0, %arg1, %arg2 : i32, i32, i32
  }
}

</mosaic_0001>

<llo_original>
// kernel: tpu_custom_call.1
$region0: #{tpu_custom_call.1}
  #allocation0 [shape = 'u32[]', space=smem, size = 0x4, offset = 0x4, fixed_abs, tag = 'smem constant byte address 0x4 - core index']
  #allocation1 [shape = 'u32[72,128]{1,0:T(1,128)}', space=vmem, size = 0x9000, scoped, tag = 'internal scratch']
  #allocation2 [shape = 'f32[16,16]{1,0:T(8,128)}', space=vmem, size = 0x2000, scoped, tag = 'scratch operand']
  %s0 = inlined_call_operand.vmem [shape: f32[1,16,32], index: 0, kind: input, shape index: {}]
  %s1 = inlined_call_operand.vmem [shape: f32[1,32,16], index: 1, kind: input, shape index: {}]
  %s2 = inlined_call_operand.hbm [shape: f32[1,16,16], index: 2, kind: output, shape index: {}]
  %s3 = sld [smem:[#allocation0]]
  $region26: #{tpu_custom_call.1} parent=0
    _
  %s5 = ssub.s32 1, %s3
  %s6 = scalar_select 0, %s5, %s3
  $region1: #{tpu_custom_call.1} parent=0
    #allocation3 [shape = 'u8[8192]{0}', space=vmem, size = 0x2000, scoped, tag = 'output window, operand 0, single buffered']
    #allocation4 [shape = 's32[1]{0}', space=sflag, size = 0x4, scoped, tag = 'scoped memory for tpu_custom_call.1']
    %7 = vsyncpa [#allocation4], 0
    // Predicated region
    $region2: #{tpu_custom_call.1} parent=1 // pred_check
      _
    $region3: #{tpu_custom_call.1} parent=1 // pred_check_branch
      %9 = sbr.rel (0) target = $region5
    $region4: #{tpu_custom_call.1} parent=1 // pred_region
      _
    $region5: #{tpu_custom_call.1} parent=1 // pred_fallthru
      _
    // Predicated region
    $region6: #{tpu_custom_call.1} parent=1 // pred_check
      _
    $region7: #{tpu_custom_call.1} parent=1 // pred_check_branch
      %11 = sbr.rel (0) target = $region9
    $region8: #{tpu_custom_call.1} parent=1 // pred_region
      _
    $region9: #{tpu_custom_call.1} parent=1 // pred_fallthru
      _
    %p12 = scmp.eq.s32.totalorder 0, 0
    // Predicated region
    $region10: #{tpu_custom_call.1} parent=1 // pred_check
      %p13 = pneg %p12
    $region11: #{tpu_custom_call.1} parent=1 // pred_check_branch
      %15 = sbr.rel (%p13) target = $region13
    $region12: #{tpu_custom_call.1} parent=1 // pred_region
      %vm16 = vcmask 130048
      %17 = vst.msk [vmem:[#allocation2] sm:$0xff] %vm16, 0.0
      %18 = vst.msk [vmem:[#allocation2 + $0x8] sm:$0xff] %vm16, 0.0
    $region13: #{tpu_custom_call.1} parent=1 // pred_fallthru
      _
    %v19 = vld [vmem:[#allocation2] sm:$0xff]
    %v20 = vld [vmem:[#allocation2 + $0x8] sm:$0xff]
    %v21 = vld [vmem:[%s0] sm:$0xff]
    %v22 = vld [vmem:[%s0 + $0x8] sm:$0xff]
    %v23 = vld [vmem:[%s1] sm:$0xff]
    %v24 = vld [vmem:[%s1 + $0x8] sm:$0xff]
    %v25 = vld [vmem:[%s1 + $0x10] sm:$0xff]
    %v26 = vld [vmem:[%s1 + $0x18] sm:$0xff]
    %vm27 = vcmask 261120
    %v29 = vsel %vm27, %v21, 0
    %v32 = vsel %vm27, %v22, 0
    %34 = vmatpush.msra.mxu0 0.0
    %35 = vmatpush.msra.mxu0 0.0
    %36 = vmatpush.msra.mxu0 0.0
    %37 = vmatpush.msra.mxu0 0.0
    %38 = vmatpush.msra.mxu0 0.0
    %39 = vmatpush.msra.mxu0 0.0
    %40 = vmatpush.msra.mxu0 0.0
    %41 = vmatpush.msra.mxu0 0.0
    %42 = vmatpush.msra.mxu0 0.0
    %43 = vmatpush.msra.mxu0 0.0
    %44 = vmatpush.msra.mxu0 0.0
    %45 = vmatpush.msra.mxu0 0.0
    %46 = vmatpush.msra.mxu0 %v26
    %47 = vmatpush.msra.mxu0 %v25
    %48 = vmatpush.msra.mxu0 %v24
    %49 = vmatpush.msra.mxu0 %v23
    %50 = vmatmul.f32.gmra.mxu0 %v29
    %v51 = vpop.f32.mrf.mxu0
    %v52 = vadd.f32 0.0, %v51
    %53 = vmatmul.f32.gmra.mxu0 %v32
    %v54 = vpop.f32.mrf.mxu0
    %v55 = vadd.f32 0.0, %v54
    %56 = vdwg.mxu0
    %v57 = vadd.f32 %v19, %v52
    %v58 = vadd.f32 %v20, %v55
    %vm59 = vcmask 130048
    %60 = vst.msk [vmem:[#allocation2] sm:$0xff] %vm59, %v57
    %61 = vst.msk [vmem:[#allocation2 + $0x8] sm:$0xff] %vm59, %v58
    // Predicated region
    $region14: #{tpu_custom_call.1} parent=1 // pred_check
      %p62 = pneg %p12
    $region15: #{tpu_custom_call.1} parent=1 // pred_check_branch
      %64 = sbr.rel (%p62) target = $region17
    $region16: #{tpu_custom_call.1} parent=1 // pred_region
      %v65 = vld [vmem:[#allocation2] sm:$0xff]
      %v66 = vld [vmem:[#allocation2 + $0x8] sm:$0xff]
      %67 = vst.msk [vmem:[#allocation3] sm:$0xff] %vm59, %v65
      %68 = vst.msk [vmem:[#allocation3 + $0x8] sm:$0xff] %vm59, %v66
    $region17: #{tpu_custom_call.1} parent=1 // pred_fallthru
      _
    // Predicated region
    $region18: #{tpu_custom_call.1} parent=1 // pred_check
      _
    $region19: #{tpu_custom_call.1} parent=1 // pred_check_branch
      %70 = sbr.rel (0) target = $region21
    $region20: #{tpu_custom_call.1} parent=1 // pred_region
      %72 = vsyncadd [#allocation4], 0
      %s73 = sshll.u32 [#allocation3], 4
      %s74 = int_to_ptr.vmem [resolvable:$true] %s73
      %s75 = sshll.u32 %s2, 4
      %s76 = int_to_ptr.hbm [resolvable:$true] %s75
      %81 = dma.vmem_to_hbm [thread:$0]  %s74, 256, %s76, [#allocation4], 128, 128, 8
    $region21: #{tpu_custom_call.1} parent=1 // pred_fallthru
      _
    // Predicated region
    $region22: #{tpu_custom_call.1} parent=1 // pred_check
      _
    $region23: #{tpu_custom_call.1} parent=1 // pred_check_branch
      %83 = sbr.rel (0) target = $region25
    $region24: #{tpu_custom_call.1} parent=1 // pred_region
      %85 = dma.done [#allocation4], 256
    $region25: #{tpu_custom_call.1} parent=1 // pred_fallthru
      _
    %86 = vsyncpa [#allocation4], 1

</llo_original>
